<compile_context>
chip_gen: v6e
topology: v6e:2x2x1
jax: 0.10.0
libtpu: 0.0.40
codegen_flags: <defaults>
</compile_context>

<pallas_src>
import jax
import jax.numpy as jnp
from jax.experimental import pallas as pl
from jax.experimental.pallas import tpu as pltpu


def _linear_kernel(x_ref, w_ref, b_ref, o_ref):
    # (TB, OBS) @ (OBS, ACT) on the MXU with f32 accumulation, + bias broadcast.
    acc = jnp.dot(x_ref[...], w_ref[...], preferred_element_type=jnp.float32)
    o_ref[...] = (acc + b_ref[...]).astype(o_ref.dtype)


def qvalue_init_params(weight, bias):
    """One-time parameter prep (hoisted out of the forward path).

    weight: (ACT, OBS) torch nn.Linear layout
    bias:   (ACT,)
    returns: w_t (OBS, ACT), b2d (1, ACT)
    """
    w_t = jnp.asarray(weight).T
    b2d = jnp.asarray(bias).reshape(1, -1)
    return w_t, b2d


def _num_parallel_tensorcores():
    """Conservative guess at TensorCores visible to one kernel launch."""
    try:
        kind = jax.devices()[0].device_kind.lower()
    except Exception:
        return 1
    # Dual-TensorCore / megacore chips benefit from >=2 'parallel' batch tiles.
    if any(tag in kind for tag in ("v4", "v5p", "v7")):
        return 2
    return 1


def _batch_tiling(B):
    """Pick (TB rows per tile, padded batch)."""
    n_cores = _num_parallel_tensorcores()
    if n_cores == 1 and B <= 1024:
        # One tile == full array: no 8-row alignment pad, single grid step.
        return B, B
    B8 = pl.cdiv(B, 8) * 8
    # At least one tile per TensorCore; cap tiles at ~1024 rows (≈85% roofline).
    n_tiles = max(n_cores, pl.cdiv(B8, 1024))
    TB = pl.cdiv(pl.cdiv(B8, n_tiles), 8) * 8
    return TB, n_tiles * TB


@jax.jit
def qvalue_forward(x, w_t, b2d):
    """Pallas forward of QValueNetwork: Q = x @ W.T + b.

    x:   (B, OBS)   float32
    w_t: (OBS, ACT) float32  (pre-transposed once by qvalue_init_params)
    b2d: (1, ACT)   float32
    returns (B, ACT) float32 Q-values, identical semantics to fc(x).
    """
    B, OBS = x.shape
    ACT = w_t.shape[1]
    dtype = x.dtype

    TB, B_pad = _batch_tiling(B)
    if B_pad != B:
        # Rare path (only when tiles can't exactly cover B); fuses under jit.
        x = jnp.pad(x, ((0, B_pad - B), (0, 0)))

    grid = (B_pad // TB,)

    itemsize = jnp.dtype(dtype).itemsize
    cost = pl.CostEstimate(
        flops=2 * B * OBS * ACT,
        transcendentals=0,
        bytes_accessed=(B_pad * OBS + w_t.size + b2d.size + B_pad * ACT) * itemsize,
    )

    out = pl.pallas_call(
        _linear_kernel,
        out_shape=jax.ShapeDtypeStruct((B_pad, ACT), dtype),
        grid=grid,
        in_specs=[
            pl.BlockSpec((TB, OBS), lambda i: (i, 0)),   # x tile per grid step
            pl.BlockSpec((OBS, ACT), lambda i: (0, 0)),  # weight resident in VMEM
            pl.BlockSpec((1, ACT), lambda i: (0, 0)),    # bias resident in VMEM
        ],
        # Last block dim (ACT) equals the full array dim -> legal without
        # 128-lane padding; avoids a 16x-larger padded writeback + slice pass.
        out_specs=pl.BlockSpec((TB, ACT), lambda i: (i, 0)),
        compiler_params=pltpu.CompilerParams(
            dimension_semantics=("parallel",),  # shard batch tiles across TCs
        ),
        cost_estimate=cost,
    )(x, w_t, b2d)

    return out[:B] if B_pad != B else out


# TODO(synk): predict_action / update (SGD step) / plot are not part of the
# forward pass and are not implemented as kernels.


if __name__ == "__main__":
    # Fully discretized MountainCar stand-in: OBS one-hot states, ACT actions.
    BATCH, OBS, ACT = 512, 128, 8

    key = jax.random.PRNGKey(0)
    kx, kw, kb = jax.random.split(key, 3)

    # Deterministic parameter init (stand-in for nn.Linear's uniform init).
    bound = 1.0 / (OBS ** 0.5)
    weight = jax.random.uniform(kw, (ACT, OBS), jnp.float32, -bound, bound)  # torch layout
    bias = jax.random.uniform(kb, (ACT,), jnp.float32, -bound, bound)

    # Input: batch of (soft) one-hot-ish state encodings.
    x = jax.random.uniform(kx, (BATCH, OBS), jnp.float32)

    # Parameter prep happens once (not per forward call).
    w_t, b2d = qvalue_init_params(weight, bias)

    q = qvalue_forward(x, w_t, b2d)
    jax.block_until_ready(q)

    # Reference check against plain JAX (same semantics as torch Linear).
    q_ref = x @ weight.T + bias
    assert q.shape == (BATCH, ACT)
    assert jnp.allclose(q, q_ref, atol=1e-5, rtol=1e-5)

    print("KERNEL_OK")
</pallas_src>

<mosaic_0001>
module attributes {stable_mosaic.version = 11 : i64} {
  func.func @_linear_kernel(%arg0: i32, %arg1: memref<512x128xf32, #tpu.memory_space<vmem>>, %arg2: memref<128x8xf32, #tpu.memory_space<vmem>>, %arg3: memref<1x8xf32, #tpu.memory_space<vmem>>, %arg4: memref<512x8xf32, #tpu.memory_space<vmem>>) attributes {dimension_semantics = [#tpu.dimension_semantics<parallel>], iteration_bounds = array<i64: 1>, scalar_prefetch = 0 : i64, scratch_operands = 0 : i64, tpu.core_type = #tpu.core_type<tc>, window_params = [{transform_indices = @transform_0, window_bounds = array<i64: 512, 128>}, {pipeline_mode = #tpu.pipeline_mode<synchronous>, transform_indices = @transform_1, window_bounds = array<i64: 128, 8>}, {pipeline_mode = #tpu.pipeline_mode<synchronous>, transform_indices = @transform_2, window_bounds = array<i64: 1, 8>}, {transform_indices = @transform_3, window_bounds = array<i64: 512, 8>}]} {
    %c0 = arith.constant 0 : index
    %c0_0 = arith.constant 0 : index
    %0 = vector.load %arg1[%c0, %c0_0] : memref<512x128xf32, #tpu.memory_space<vmem>>, vector<512x128xf32>
    %c0_1 = arith.constant 0 : index
    %c0_2 = arith.constant 0 : index
    %1 = vector.load %arg2[%c0_1, %c0_2] : memref<128x8xf32, #tpu.memory_space<vmem>>, vector<128x8xf32>
    %cst = arith.constant dense<0.000000e+00> : vector<512x8xf32>
    %2 = tpu.matmul %0, %1, %cst {dimension_numbers = #tpu.dot_dimension_numbers<[1], [0], [0], [1], [0, 0, 1, 1], [], []>} : vector<512x128xf32>, vector<128x8xf32>, vector<512x8xf32> -> vector<512x8xf32>
    %c0_3 = arith.constant 0 : index
    %c0_4 = arith.constant 0 : index
    %3 = vector.load %arg3[%c0_3, %c0_4] : memref<1x8xf32, #tpu.memory_space<vmem>>, vector<1x8xf32>
    %4 = vector.broadcast %3 : vector<1x8xf32> to vector<512x8xf32>
    %5 = arith.addf %2, %4 : vector<512x8xf32>
    %c0_5 = arith.constant 0 : index
    %c0_6 = arith.constant 0 : index
    %6 = vector.load %arg4[%c0_5, %c0_6] : memref<512x8xf32, #tpu.memory_space<vmem>>, vector<512x8xf32>
    tpu.vector_store %arg4[%c0_5, %c0_6], %5 {strides = array<i32>} : memref<512x8xf32, #tpu.memory_space<vmem>>, vector<512x8xf32>,
    return
  }
  func.func @transform_0(%arg0: i32) -> (i32, i32) {
    %c0_i32 = arith.constant 0 : i32
    %c0_i32_0 = arith.constant 0 : i32
    return %arg0, %c0_i32 : i32, i32
  }
  func.func @transform_1(%arg0: i32) -> (i32, i32) {
    %c0_i32 = arith.constant 0 : i32
    %c0_i32_0 = arith.constant 0 : i32
    %c0_i32_1 = arith.constant 0 : i32
    return %c0_i32, %c0_i32_0 : i32, i32
  }
  func.func @transform_2(%arg0: i32) -> (i32, i32) {
    %c0_i32 = arith.constant 0 : i32
    %c0_i32_0 = arith.constant 0 : i32
    %c0_i32_1 = arith.constant 0 : i32
    return %c0_i32, %c0_i32_0 : i32, i32
  }
  func.func @transform_3(%arg0: i32) -> (i32, i32) {
    %c0_i32 = arith.constant 0 : i32
    %c0_i32_0 = arith.constant 0 : i32
    return %arg0, %c0_i32 : i32, i32
  }
}

</mosaic_0001>

<llo_original>
// kernel: qvalue_forward.1
$region0: #{qvalue_forward.1}
  #allocation0 [shape = 'u32[]', space=smem, size = 0x4, offset = 0x4, fixed_abs, tag = 'smem constant byte address 0x4 - core index']
  #allocation1 [shape = 'u32[144,128]{1,0:T(1,128)}', space=vmem, size = 0x12000, scoped, tag = 'internal scratch']
  %s0 = inlined_call_operand.hbm [shape: f32[512,128], index: 0, kind: input, shape index: {}]
  %s1 = inlined_call_operand.vmem [shape: f32[128,8], index: 1, kind: input, shape index: {}]
  %s2 = inlined_call_operand.vmem [shape: f32[1,8], index: 2, kind: input, shape index: {}]
  %s3 = inlined_call_operand.vmem [shape: f32[512,8], index: 3, kind: output, shape index: {}]
  %s4 = sld [smem:[#allocation0]]
  $region26: #{qvalue_forward.1} parent=0
    _
  %s6 = ssub.s32 1, %s4
  %s7 = scalar_select 0, %s6, %s4
  $region1: #{qvalue_forward.1} parent=0
    #allocation2 [shape = 'u8[262144]{0}', space=vmem, size = 0x40000, scoped, tag = 'input window, operand 0, single buffered']
    #allocation3 [shape = 's32[1]{0}', space=sflag, size = 0x4, scoped, tag = 'scoped memory for qvalue_forward.1']
    %8 = vsyncpa [#allocation3], 0
    // Predicated region
    $region2: #{qvalue_forward.1} parent=1 // pred_check
      _
    $region3: #{qvalue_forward.1} parent=1 // pred_check_branch
      %10 = sbr.rel (0) target = $region5
    $region4: #{qvalue_forward.1} parent=1 // pred_region
      %s12 = ssub.s32 8192, 8192
      %13 = vsyncadd [#allocation3], %s12
      %s14 = sshll.u32 [#allocation2], 4
      %s15 = int_to_ptr.vmem [resolvable:$true] %s14
      %20 = dma.hbm_to_vmem [thread:$0]  %s0, 8192, %s15, [#allocation3], 128, 128, 8
    $region5: #{qvalue_forward.1} parent=1 // pred_fallthru
      _
    // Predicated region
    $region6: #{qvalue_forward.1} parent=1 // pred_check
      _
    $region7: #{qvalue_forward.1} parent=1 // pred_check_branch
      %22 = sbr.rel (0) target = $region9
    $region8: #{qvalue_forward.1} parent=1 // pred_region
      _
    $region9: #{qvalue_forward.1} parent=1 // pred_fallthru
      _
    // Predicated region
    $region10: #{qvalue_forward.1} parent=1 // pred_check
      _
    $region11: #{qvalue_forward.1} parent=1 // pred_check_branch
      %24 = sbr.rel (0) target = $region13
    $region12: #{qvalue_forward.1} parent=1 // pred_region
      _
    $region13: #{qvalue_forward.1} parent=1 // pred_fallthru
      _
    // Predicated region
    $region14: #{qvalue_forward.1} parent=1 // pred_check
      _
    $region15: #{qvalue_forward.1} parent=1 // pred_check_branch
      %26 = sbr.rel (0) target = $region17
    $region16: #{qvalue_forward.1} parent=1 // pred_region
      %27 = dma.done [#allocation3], 8192
    $region17: #{qvalue_forward.1} parent=1 // pred_fallthru
      _
    %v28 = vld [vmem:[#allocation2] sm:$0xff]
    %v29 = vld [vmem:[#allocation2 + $0x8] sm:$0xff]
    %v30 = vld [vmem:[#allocation2 + $0x10] sm:$0xff]
    %v31 = vld [vmem:[#allocation2 + $0x18] sm:$0xff]
    %v32 = vld [vmem:[#allocation2 + $0x20] sm:$0xff]
    %v33 = vld [vmem:[#allocation2 + $0x28] sm:$0xff]
    %v34 = vld [vmem:[#allocation2 + $0x30] sm:$0xff]
    %v35 = vld [vmem:[#allocation2 + $0x38] sm:$0xff]
    %v36 = vld [vmem:[#allocation2 + $0x40] sm:$0xff]
    %v37 = vld [vmem:[#allocation2 + $0x48] sm:$0xff]
    %v38 = vld [vmem:[#allocation2 + $0x50] sm:$0xff]
    %v39 = vld [vmem:[#allocation2 + $0x58] sm:$0xff]
    %v40 = vld [vmem:[#allocation2 + $0x60] sm:$0xff]
    %v41 = vld [vmem:[#allocation2 + $0x68] sm:$0xff]
    %v42 = vld [vmem:[#allocation2 + $0x70] sm:$0xff]
    %v43 = vld [vmem:[#allocation2 + $0x78] sm:$0xff]
    %v44 = vld [vmem:[#allocation2 + $0x80] sm:$0xff]
    %v45 = vld [vmem:[#allocation2 + $0x88] sm:$0xff]
    %v46 = vld [vmem:[#allocation2 + $0x90] sm:$0xff]
    %v47 = vld [vmem:[#allocation2 + $0x98] sm:$0xff]
    %v48 = vld [vmem:[#allocation2 + $0xa0] sm:$0xff]
    %v49 = vld [vmem:[#allocation2 + $0xa8] sm:$0xff]
    %v50 = vld [vmem:[#allocation2 + $0xb0] sm:$0xff]
    %v51 = vld [vmem:[#allocation2 + $0xb8] sm:$0xff]
    %v52 = vld [vmem:[#allocation2 + $0xc0] sm:$0xff]
    %v53 = vld [vmem:[#allocation2 + $0xc8] sm:$0xff]
    %v54 = vld [vmem:[#allocation2 + $0xd0] sm:$0xff]
    %v55 = vld [vmem:[#allocation2 + $0xd8] sm:$0xff]
    %v56 = vld [vmem:[#allocation2 + $0xe0] sm:$0xff]
    %v57 = vld [vmem:[#allocation2 + $0xe8] sm:$0xff]
    %v58 = vld [vmem:[#allocation2 + $0xf0] sm:$0xff]
    %v59 = vld [vmem:[#allocation2 + $0xf8] sm:$0xff]
    %v60 = vld [vmem:[#allocation2 + $0x100] sm:$0xff]
    %v61 = vld [vmem:[#allocation2 + $0x108] sm:$0xff]
    %v62 = vld [vmem:[#allocation2 + $0x110] sm:$0xff]
    %v63 = vld [vmem:[#allocation2 + $0x118] sm:$0xff]
    %v64 = vld [vmem:[#allocation2 + $0x120] sm:$0xff]
    %v65 = vld [vmem:[#allocation2 + $0x128] sm:$0xff]
    %v66 = vld [vmem:[#allocation2 + $0x130] sm:$0xff]
    %v67 = vld [vmem:[#allocation2 + $0x138] sm:$0xff]
    %v68 = vld [vmem:[#allocation2 + $0x140] sm:$0xff]
    %v69 = vld [vmem:[#allocation2 + $0x148] sm:$0xff]
    %v70 = vld [vmem:[#allocation2 + $0x150] sm:$0xff]
    %v71 = vld [vmem:[#allocation2 + $0x158] sm:$0xff]
    %v72 = vld [vmem:[#allocation2 + $0x160] sm:$0xff]
    %v73 = vld [vmem:[#allocation2 + $0x168] sm:$0xff]
    %v74 = vld [vmem:[#allocation2 + $0x170] sm:$0xff]
    %v75 = vld [vmem:[#allocation2 + $0x178] sm:$0xff]
    %v76 = vld [vmem:[#allocation2 + $0x180] sm:$0xff]
    %v77 = vld [vmem:[#allocation2 + $0x188] sm:$0xff]
    %v78 = vld [vmem:[#allocation2 + $0x190] sm:$0xff]
    %v79 = vld [vmem:[#allocation2 + $0x198] sm:$0xff]
    %v80 = vld [vmem:[#allocation2 + $0x1a0] sm:$0xff]
    %v81 = vld [vmem:[#allocation2 + $0x1a8] sm:$0xff]
    %v82 = vld [vmem:[#allocation2 + $0x1b0] sm:$0xff]
    %v83 = vld [vmem:[#allocation2 + $0x1b8] sm:$0xff]
    %v84 = vld [vmem:[#allocation2 + $0x1c0] sm:$0xff]
    %v85 = vld [vmem:[#allocation2 + $0x1c8] sm:$0xff]
    %v86 = vld [vmem:[#allocation2 + $0x1d0] sm:$0xff]
    %v87 = vld [vmem:[#allocation2 + $0x1d8] sm:$0xff]
    %v88 = vld [vmem:[#allocation2 + $0x1e0] sm:$0xff]
    %v89 = vld [vmem:[#allocation2 + $0x1e8] sm:$0xff]
    %v90 = vld [vmem:[#allocation2 + $0x1f0] sm:$0xff]
    %v91 = vld [vmem:[#allocation2 + $0x1f8] sm:$0xff]
    %v92 = vld [vmem:[%s1] sm:$0xff]
    %v93 = vld [vmem:[%s1 + $0x8] sm:$0xff]
    %v94 = vld [vmem:[%s1 + $0x10] sm:$0xff]
    %v95 = vld [vmem:[%s1 + $0x18] sm:$0xff]
    %v96 = vld [vmem:[%s1 + $0x20] sm:$0xff]
    %v97 = vld [vmem:[%s1 + $0x28] sm:$0xff]
    %v98 = vld [vmem:[%s1 + $0x30] sm:$0xff]
    %v99 = vld [vmem:[%s1 + $0x38] sm:$0xff]
    %v100 = vld [vmem:[%s1 + $0x40] sm:$0xff]
    %v101 = vld [vmem:[%s1 + $0x48] sm:$0xff]
    %v102 = vld [vmem:[%s1 + $0x50] sm:$0xff]
    %v103 = vld [vmem:[%s1 + $0x58] sm:$0xff]
    %v104 = vld [vmem:[%s1 + $0x60] sm:$0xff]
    %v105 = vld [vmem:[%s1 + $0x68] sm:$0xff]
    %v106 = vld [vmem:[%s1 + $0x70] sm:$0xff]
    %v107 = vld [vmem:[%s1 + $0x78] sm:$0xff]
    %v108 = vld [vmem:[%s2] sm:$0x1]
    %v110 = vlaneseq
    %v111 = vshrl.u32 %v110, 7
    %v112 = vsub.s32 0, %v111
    %v113 = vrot.slane %v108, %v112
    %115 = vmatprep.subr.mxu0 0.0
    %116 = vmatpush1.msra.mxu0 %v107
    %117 = vmatprep.subr.mxu0 0.0
    %118 = vmatpush1.msra.mxu0 %v106
    %119 = vmatprep.subr.mxu0 0.0
    %120 = vmatpush1.msra.mxu0 %v105
    %121 = vmatprep.subr.mxu0 0.0
    %122 = vmatpush1.msra.mxu0 %v104
    %123 = vmatprep.subr.mxu0 0.0
    %124 = vmatpush1.msra.mxu0 %v103
    %125 = vmatprep.subr.mxu0 0.0
    %126 = vmatpush1.msra.mxu0 %v102
    %127 = vmatprep.subr.mxu0 0.0
    %128 = vmatpush1.msra.mxu0 %v101
    %129 = vmatprep.subr.mxu0 0.0
    %130 = vmatpush1.msra.mxu0 %v100
    %131 = vmatprep.subr.mxu0 0.0
    %132 = vmatpush1.msra.mxu0 %v99
    %133 = vmatprep.subr.mxu0 0.0
    %134 = vmatpush1.msra.mxu0 %v98
    %135 = vmatprep.subr.mxu0 0.0
    %136 = vmatpush1.msra.mxu0 %v97
    %137 = vmatprep.subr.mxu0 0.0
    %138 = vmatpush1.msra.mxu0 %v96
    %139 = vmatprep.subr.mxu0 0.0
    %140 = vmatpush1.msra.mxu0 %v95
    %141 = vmatprep.subr.mxu0 0.0
    %142 = vmatpush1.msra.mxu0 %v94
    %143 = vmatprep.subr.mxu0 0.0
    %144 = vmatpush1.msra.mxu0 %v93
    %145 = vmatprep.subr.mxu0 0.0
    %146 = vmatpush1.msra.mxu0 %v92
    %147 = vmatprep.subr.mxu0 0.0
    %148 = vmatpush2.msra.mxu0 0.0
    %149 = vmatprep.subr.mxu0 0.0
    %150 = vmatpush2.msra.mxu0 0.0
    %151 = vmatprep.subr.mxu0 0.0
    %152 = vmatpush2.msra.mxu0 0.0
    %153 = vmatprep.subr.mxu0 0.0
    %154 = vmatpush2.msra.mxu0 0.0
    %155 = vmatprep.subr.mxu0 0.0
    %156 = vmatpush2.msra.mxu0 0.0
    %157 = vmatprep.subr.mxu0 0.0
    %158 = vmatpush2.msra.mxu0 0.0
    %159 = vmatprep.subr.mxu0 0.0
    %160 = vmatpush2.msra.mxu0 0.0
    %161 = vmatprep.subr.mxu0 0.0
    %162 = vmatpush2.msra.mxu0 0.0
    %163 = vmatprep.subr.mxu0 0.0
    %164 = vmatpush2.msra.mxu0 0.0
    %165 = vmatprep.subr.mxu0 0.0
    %166 = vmatpush2.msra.mxu0 0.0
    %167 = vmatprep.subr.mxu0 0.0
    %168 = vmatpush2.msra.mxu0 0.0
    %169 = vmatprep.subr.mxu0 0.0
    %170 = vmatpush2.msra.mxu0 0.0
    %171 = vmatprep.subr.mxu0 0.0
    %172 = vmatpush2.msra.mxu0 0.0
    %173 = vmatprep.subr.mxu0 0.0
    %174 = vmatpush2.msra.mxu0 0.0
    %175 = vmatprep.subr.mxu0 0.0
    %176 = vmatpush2.msra.mxu0 0.0
    %177 = vmatprep.subr.mxu0 0.0
    %178 = vmatpush2.msra.mxu0 0.0
    %179 = vmatprep.mubr.f32.mxu0 0.0
    %180 = vmatmul.mubr.f32.gmra.mxu0 %v28
    %v181 = vpop.f32.mrf.mxu0
    %v182 = vadd.f32 %v113, %v181
    %v183 = vpop.f32.mrf.mxu0
    %184 = vmatprep.mubr.f32.mxu0 0.0
    %185 = vmatmul.mubr.f32.gmra.mxu0 %v29
    %v186 = vpop.f32.mrf.mxu0
    %v187 = vadd.f32 %v113, %v186
    %v188 = vpop.f32.mrf.mxu0
    %189 = vmatprep.mubr.f32.mxu0 0.0
    %190 = vmatmul.mubr.f32.gmra.mxu0 %v30
    %v191 = vpop.f32.mrf.mxu0
    %v192 = vadd.f32 %v113, %v191
    %v193 = vpop.f32.mrf.mxu0
    %194 = vmatprep.mubr.f32.mxu0 0.0
    %195 = vmatmul.mubr.f32.gmra.mxu0 %v31
    %v196 = vpop.f32.mrf.mxu0
    %v197 = vadd.f32 %v113, %v196
    %v198 = vpop.f32.mrf.mxu0
    %199 = vmatprep.mubr.f32.mxu0 0.0
    %200 = vmatmul.mubr.f32.gmra.mxu0 %v32
    %v201 = vpop.f32.mrf.mxu0
    %v202 = vadd.f32 %v113, %v201
    %v203 = vpop.f32.mrf.mxu0
    %204 = vmatprep.mubr.f32.mxu0 0.0
    %205 = vmatmul.mubr.f32.gmra.mxu0 %v33
    %v206 = vpop.f32.mrf.mxu0
    %v207 = vadd.f32 %v113, %v206
    %v208 = vpop.f32.mrf.mxu0
    %209 = vmatprep.mubr.f32.mxu0 0.0
    %210 = vmatmul.mubr.f32.gmra.mxu0 %v34
    %v211 = vpop.f32.mrf.mxu0
    %v212 = vadd.f32 %v113, %v211
    %v213 = vpop.f32.mrf.mxu0
    %214 = vmatprep.mubr.f32.mxu0 0.0
    %215 = vmatmul.mubr.f32.gmra.mxu0 %v35
    %v216 = vpop.f32.mrf.mxu0
    %v217 = vadd.f32 %v113, %v216
    %v218 = vpop.f32.mrf.mxu0
    %219 = vmatprep.mubr.f32.mxu0 0.0
    %220 = vmatmul.mubr.f32.gmra.mxu0 %v36
    %v221 = vpop.f32.mrf.mxu0
    %v222 = vadd.f32 %v113, %v221
    %v223 = vpop.f32.mrf.mxu0
    %224 = vmatprep.mubr.f32.mxu0 0.0
    %225 = vmatmul.mubr.f32.gmra.mxu0 %v37
    %v226 = vpop.f32.mrf.mxu0
    %v227 = vadd.f32 %v113, %v226
    %v228 = vpop.f32.mrf.mxu0
    %229 = vmatprep.mubr.f32.mxu0 0.0
    %230 = vmatmul.mubr.f32.gmra.mxu0 %v38
    %v231 = vpop.f32.mrf.mxu0
    %v232 = vadd.f32 %v113, %v231
    %v233 = vpop.f32.mrf.mxu0
    %234 = vmatprep.mubr.f32.mxu0 0.0
    %235 = vmatmul.mubr.f32.gmra.mxu0 %v39
    %v236 = vpop.f32.mrf.mxu0
    %v237 = vadd.f32 %v113, %v236
    %v238 = vpop.f32.mrf.mxu0
    %239 = vmatprep.mubr.f32.mxu0 0.0
    %240 = vmatmul.mubr.f32.gmra.mxu0 %v40
    %v241 = vpop.f32.mrf.mxu0
    %v242 = vadd.f32 %v113, %v241
    %v243 = vpop.f32.mrf.mxu0
    %244 = vmatprep.mubr.f32.mxu0 0.0
    %245 = vmatmul.mubr.f32.gmra.mxu0 %v41
    %v246 = vpop.f32.mrf.mxu0
    %v247 = vadd.f32 %v113, %v246
    %v248 = vpop.f32.mrf.mxu0
    %249 = vmatprep.mubr.f32.mxu0 0.0
    %250 = vmatmul.mubr.f32.gmra.mxu0 %v42
    %v251 = vpop.f32.mrf.mxu0
    %v252 = vadd.f32 %v113, %v251
    %v253 = vpop.f32.mrf.mxu0
    %254 = vmatprep.mubr.f32.mxu0 0.0
    %255 = vmatmul.mubr.f32.gmra.mxu0 %v43
    %v256 = vpop.f32.mrf.mxu0
    %v257 = vadd.f32 %v113, %v256
    %v258 = vpop.f32.mrf.mxu0
    %259 = vmatprep.mubr.f32.mxu0 0.0
    %260 = vmatmul.mubr.f32.gmra.mxu0 %v44
    %v261 = vpop.f32.mrf.mxu0
    %v262 = vadd.f32 %v113, %v261
    %v263 = vpop.f32.mrf.mxu0
    %264 = vmatprep.mubr.f32.mxu0 0.0
    %265 = vmatmul.mubr.f32.gmra.mxu0 %v45
    %v266 = vpop.f32.mrf.mxu0
    %v267 = vadd.f32 %v113, %v266
    %v268 = vpop.f32.mrf.mxu0
    %269 = vmatprep.mubr.f32.mxu0 0.0
    %270 = vmatmul.mubr.f32.gmra.mxu0 %v46
    %v271 = vpop.f32.mrf.mxu0
    %v272 = vadd.f32 %v113, %v271
    %v273 = vpop.f32.mrf.mxu0
    %274 = vmatprep.mubr.f32.mxu0 0.0
    %275 = vmatmul.mubr.f32.gmra.mxu0 %v47
    %v276 = vpop.f32.mrf.mxu0
    %v277 = vadd.f32 %v113, %v276
    %v278 = vpop.f32.mrf.mxu0
    %279 = vmatprep.mubr.f32.mxu0 0.0
    %280 = vmatmul.mubr.f32.gmra.mxu0 %v48
    %v281 = vpop.f32.mrf.mxu0
    %v282 = vadd.f32 %v113, %v281
    %v283 = vpop.f32.mrf.mxu0
    %284 = vmatprep.mubr.f32.mxu0 0.0
    %285 = vmatmul.mubr.f32.gmra.mxu0 %v49
    %v286 = vpop.f32.mrf.mxu0
    %v287 = vadd.f32 %v113, %v286
    %v288 = vpop.f32.mrf.mxu0
    %289 = vmatprep.mubr.f32.mxu0 0.0
    %290 = vmatmul.mubr.f32.gmra.mxu0 %v50
    %v291 = vpop.f32.mrf.mxu0
    %v292 = vadd.f32 %v113, %v291
    %v293 = vpop.f32.mrf.mxu0
    %294 = vmatprep.mubr.f32.mxu0 0.0
    %295 = vmatmul.mubr.f32.gmra.mxu0 %v51
    %v296 = vpop.f32.mrf.mxu0
    %v297 = vadd.f32 %v113, %v296
    %v298 = vpop.f32.mrf.mxu0
    %299 = vmatprep.mubr.f32.mxu0 0.0
    %300 = vmatmul.mubr.f32.gmra.mxu0 %v52
    %v301 = vpop.f32.mrf.mxu0
    %v302 = vadd.f32 %v113, %v301
    %v303 = vpop.f32.mrf.mxu0
    %304 = vmatprep.mubr.f32.mxu0 0.0
    %305 = vmatmul.mubr.f32.gmra.mxu0 %v53
    %v306 = vpop.f32.mrf.mxu0
    %v307 = vadd.f32 %v113, %v306
    %v308 = vpop.f32.mrf.mxu0
    %309 = vmatprep.mubr.f32.mxu0 0.0
    %310 = vmatmul.mubr.f32.gmra.mxu0 %v54
    %v311 = vpop.f32.mrf.mxu0
    %v312 = vadd.f32 %v113, %v311
    %v313 = vpop.f32.mrf.mxu0
    %314 = vmatprep.mubr.f32.mxu0 0.0
    %315 = vmatmul.mubr.f32.gmra.mxu0 %v55
    %v316 = vpop.f32.mrf.mxu0
    %v317 = vadd.f32 %v113, %v316
    %v318 = vpop.f32.mrf.mxu0
    %319 = vmatprep.mubr.f32.mxu0 0.0
    %320 = vmatmul.mubr.f32.gmra.mxu0 %v56
    %v321 = vpop.f32.mrf.mxu0
    %v322 = vadd.f32 %v113, %v321
    %v323 = vpop.f32.mrf.mxu0
    %324 = vmatprep.mubr.f32.mxu0 0.0
    %325 = vmatmul.mubr.f32.gmra.mxu0 %v57
    %v326 = vpop.f32.mrf.mxu0
    %v327 = vadd.f32 %v113, %v326
    %v328 = vpop.f32.mrf.mxu0
    %329 = vmatprep.mubr.f32.mxu0 0.0
    %330 = vmatmul.mubr.f32.gmra.mxu0 %v58
    %v331 = vpop.f32.mrf.mxu0
    %v332 = vadd.f32 %v113, %v331
    %v333 = vpop.f32.mrf.mxu0
    %334 = vmatprep.mubr.f32.mxu0 0.0
    %335 = vmatmul.mubr.f32.gmra.mxu0 %v59
    %v336 = vpop.f32.mrf.mxu0
    %v337 = vadd.f32 %v113, %v336
    %v338 = vpop.f32.mrf.mxu0
    %339 = vmatprep.mubr.f32.mxu0 0.0
    %340 = vmatmul.mubr.f32.gmra.mxu0 %v60
    %v341 = vpop.f32.mrf.mxu0
    %v342 = vadd.f32 %v113, %v341
    %v343 = vpop.f32.mrf.mxu0
    %344 = vmatprep.mubr.f32.mxu0 0.0
    %345 = vmatmul.mubr.f32.gmra.mxu0 %v61
    %v346 = vpop.f32.mrf.mxu0
    %v347 = vadd.f32 %v113, %v346
    %v348 = vpop.f32.mrf.mxu0
    %349 = vmatprep.mubr.f32.mxu0 0.0
    %350 = vmatmul.mubr.f32.gmra.mxu0 %v62
    %v351 = vpop.f32.mrf.mxu0
    %v352 = vadd.f32 %v113, %v351
    %v353 = vpop.f32.mrf.mxu0
    %354 = vmatprep.mubr.f32.mxu0 0.0
    %355 = vmatmul.mubr.f32.gmra.mxu0 %v63
    %v356 = vpop.f32.mrf.mxu0
    %v357 = vadd.f32 %v113, %v356
    %v358 = vpop.f32.mrf.mxu0
    %359 = vmatprep.mubr.f32.mxu0 0.0
    %360 = vmatmul.mubr.f32.gmra.mxu0 %v64
    %v361 = vpop.f32.mrf.mxu0
    %v362 = vadd.f32 %v113, %v361
    %v363 = vpop.f32.mrf.mxu0
    %364 = vmatprep.mubr.f32.mxu0 0.0
    %365 = vmatmul.mubr.f32.gmra.mxu0 %v65
    %v366 = vpop.f32.mrf.mxu0
    %v367 = vadd.f32 %v113, %v366
    %v368 = vpop.f32.mrf.mxu0
    %369 = vmatprep.mubr.f32.mxu0 0.0
    %370 = vmatmul.mubr.f32.gmra.mxu0 %v66
    %v371 = vpop.f32.mrf.mxu0
    %v372 = vadd.f32 %v113, %v371
    %v373 = vpop.f32.mrf.mxu0
    %374 = vmatprep.mubr.f32.mxu0 0.0
    %375 = vmatmul.mubr.f32.gmra.mxu0 %v67
    %v376 = vpop.f32.mrf.mxu0
    %v377 = vadd.f32 %v113, %v376
    %v378 = vpop.f32.mrf.mxu0
    %379 = vmatprep.mubr.f32.mxu0 0.0
    %380 = vmatmul.mubr.f32.gmra.mxu0 %v68
    %v381 = vpop.f32.mrf.mxu0
    %v382 = vadd.f32 %v113, %v381
    %v383 = vpop.f32.mrf.mxu0
    %384 = vmatprep.mubr.f32.mxu0 0.0
    %385 = vmatmul.mubr.f32.gmra.mxu0 %v69
    %v386 = vpop.f32.mrf.mxu0
    %v387 = vadd.f32 %v113, %v386
    %v388 = vpop.f32.mrf.mxu0
    %389 = vmatprep.mubr.f32.mxu0 0.0
    %390 = vmatmul.mubr.f32.gmra.mxu0 %v70
    %v391 = vpop.f32.mrf.mxu0
    %v392 = vadd.f32 %v113, %v391
    %v393 = vpop.f32.mrf.mxu0
    %394 = vmatprep.mubr.f32.mxu0 0.0
    %395 = vmatmul.mubr.f32.gmra.mxu0 %v71
    %v396 = vpop.f32.mrf.mxu0
    %v397 = vadd.f32 %v113, %v396
    %v398 = vpop.f32.mrf.mxu0
    %399 = vmatprep.mubr.f32.mxu0 0.0
    %400 = vmatmul.mubr.f32.gmra.mxu0 %v72
    %v401 = vpop.f32.mrf.mxu0
    %v402 = vadd.f32 %v113, %v401
    %v403 = vpop.f32.mrf.mxu0
    %404 = vmatprep.mubr.f32.mxu0 0.0
    %405 = vmatmul.mubr.f32.gmra.mxu0 %v73
    %v406 = vpop.f32.mrf.mxu0
    %v407 = vadd.f32 %v113, %v406
    %v408 = vpop.f32.mrf.mxu0
    %409 = vmatprep.mubr.f32.mxu0 0.0
    %410 = vmatmul.mubr.f32.gmra.mxu0 %v74
    %v411 = vpop.f32.mrf.mxu0
    %v412 = vadd.f32 %v113, %v411
    %v413 = vpop.f32.mrf.mxu0
    %414 = vmatprep.mubr.f32.mxu0 0.0
    %415 = vmatmul.mubr.f32.gmra.mxu0 %v75
    %v416 = vpop.f32.mrf.mxu0
    %v417 = vadd.f32 %v113, %v416
    %v418 = vpop.f32.mrf.mxu0
    %419 = vmatprep.mubr.f32.mxu0 0.0
    %420 = vmatmul.mubr.f32.gmra.mxu0 %v76
    %v421 = vpop.f32.mrf.mxu0
    %v422 = vadd.f32 %v113, %v421
    %v423 = vpop.f32.mrf.mxu0
    %424 = vmatprep.mubr.f32.mxu0 0.0
    %425 = vmatmul.mubr.f32.gmra.mxu0 %v77
    %v426 = vpop.f32.mrf.mxu0
    %v427 = vadd.f32 %v113, %v426
    %v428 = vpop.f32.mrf.mxu0
    %429 = vmatprep.mubr.f32.mxu0 0.0
    %430 = vmatmul.mubr.f32.gmra.mxu0 %v78
    %v431 = vpop.f32.mrf.mxu0
    %v432 = vadd.f32 %v113, %v431
    %v433 = vpop.f32.mrf.mxu0
    %434 = vmatprep.mubr.f32.mxu0 0.0
    %435 = vmatmul.mubr.f32.gmra.mxu0 %v79
    %v436 = vpop.f32.mrf.mxu0
    %v437 = vadd.f32 %v113, %v436
    %v438 = vpop.f32.mrf.mxu0
    %439 = vmatprep.mubr.f32.mxu0 0.0
    %440 = vmatmul.mubr.f32.gmra.mxu0 %v80
    %v441 = vpop.f32.mrf.mxu0
    %v442 = vadd.f32 %v113, %v441
    %v443 = vpop.f32.mrf.mxu0
    %444 = vmatprep.mubr.f32.mxu0 0.0
    %445 = vmatmul.mubr.f32.gmra.mxu0 %v81
    %v446 = vpop.f32.mrf.mxu0
    %v447 = vadd.f32 %v113, %v446
    %v448 = vpop.f32.mrf.mxu0
    %449 = vmatprep.mubr.f32.mxu0 0.0
    %450 = vmatmul.mubr.f32.gmra.mxu0 %v82
    %v451 = vpop.f32.mrf.mxu0
    %v452 = vadd.f32 %v113, %v451
    %v453 = vpop.f32.mrf.mxu0
    %454 = vmatprep.mubr.f32.mxu0 0.0
    %455 = vmatmul.mubr.f32.gmra.mxu0 %v83
    %v456 = vpop.f32.mrf.mxu0
    %v457 = vadd.f32 %v113, %v456
    %v458 = vpop.f32.mrf.mxu0
    %459 = vmatprep.mubr.f32.mxu0 0.0
    %460 = vmatmul.mubr.f32.gmra.mxu0 %v84
    %v461 = vpop.f32.mrf.mxu0
    %v462 = vadd.f32 %v113, %v461
    %v463 = vpop.f32.mrf.mxu0
    %464 = vmatprep.mubr.f32.mxu0 0.0
    %465 = vmatmul.mubr.f32.gmra.mxu0 %v85
    %v466 = vpop.f32.mrf.mxu0
    %v467 = vadd.f32 %v113, %v466
    %v468 = vpop.f32.mrf.mxu0
    %469 = vmatprep.mubr.f32.mxu0 0.0
    %470 = vmatmul.mubr.f32.gmra.mxu0 %v86
    %v471 = vpop.f32.mrf.mxu0
    %v472 = vadd.f32 %v113, %v471
    %v473 = vpop.f32.mrf.mxu0
    %474 = vmatprep.mubr.f32.mxu0 0.0
    %475 = vmatmul.mubr.f32.gmra.mxu0 %v87
    %v476 = vpop.f32.mrf.mxu0
    %v477 = vadd.f32 %v113, %v476
    %v478 = vpop.f32.mrf.mxu0
    %479 = vmatprep.mubr.f32.mxu0 0.0
    %480 = vmatmul.mubr.f32.gmra.mxu0 %v88
    %v481 = vpop.f32.mrf.mxu0
    %v482 = vadd.f32 %v113, %v481
    %v483 = vpop.f32.mrf.mxu0
    %484 = vmatprep.mubr.f32.mxu0 0.0
    %485 = vmatmul.mubr.f32.gmra.mxu0 %v89
    %v486 = vpop.f32.mrf.mxu0
    %v487 = vadd.f32 %v113, %v486
    %v488 = vpop.f32.mrf.mxu0
    %489 = vmatprep.mubr.f32.mxu0 0.0
    %490 = vmatmul.mubr.f32.gmra.mxu0 %v90
    %v491 = vpop.f32.mrf.mxu0
    %v492 = vadd.f32 %v113, %v491
    %v493 = vpop.f32.mrf.mxu0
    %494 = vmatprep.mubr.f32.mxu0 0.0
    %495 = vmatmul.mubr.f32.gmra.mxu0 %v91
    %v496 = vpop.f32.mrf.mxu0
    %v497 = vadd.f32 %v113, %v496
    %v498 = vpop.f32.mrf.mxu0
    %499 = vdwg.mxu0
    %vm500 = vcmask 64512
    %501 = vst.msk [vmem:[%s3] sm:$0xff] %vm500, %v182
    %502 = vst.msk [vmem:[%s3 + $0x8] sm:$0xff] %vm500, %v187
    %503 = vst.msk [vmem:[%s3 + $0x10] sm:$0xff] %vm500, %v192
    %504 = vst.msk [vmem:[%s3 + $0x18] sm:$0xff] %vm500, %v197
    %505 = vst.msk [vmem:[%s3 + $0x20] sm:$0xff] %vm500, %v202
    %506 = vst.msk [vmem:[%s3 + $0x28] sm:$0xff] %vm500, %v207
    %507 = vst.msk [vmem:[%s3 + $0x30] sm:$0xff] %vm500, %v212
    %508 = vst.msk [vmem:[%s3 + $0x38] sm:$0xff] %vm500, %v217
    %509 = vst.msk [vmem:[%s3 + $0x40] sm:$0xff] %vm500, %v222
    %510 = vst.msk [vmem:[%s3 + $0x48] sm:$0xff] %vm500, %v227
    %511 = vst.msk [vmem:[%s3 + $0x50] sm:$0xff] %vm500, %v232
    %512 = vst.msk [vmem:[%s3 + $0x58] sm:$0xff] %vm500, %v237
    %513 = vst.msk [vmem:[%s3 + $0x60] sm:$0xff] %vm500, %v242
    %514 = vst.msk [vmem:[%s3 + $0x68] sm:$0xff] %vm500, %v247
    %515 = vst.msk [vmem:[%s3 + $0x70] sm:$0xff] %vm500, %v252
    %516 = vst.msk [vmem:[%s3 + $0x78] sm:$0xff] %vm500, %v257
    %517 = vst.msk [vmem:[%s3 + $0x80] sm:$0xff] %vm500, %v262
    %518 = vst.msk [vmem:[%s3 + $0x88] sm:$0xff] %vm500, %v267
    %519 = vst.msk [vmem:[%s3 + $0x90] sm:$0xff] %vm500, %v272
    %520 = vst.msk [vmem:[%s3 + $0x98] sm:$0xff] %vm500, %v277
    %521 = vst.msk [vmem:[%s3 + $0xa0] sm:$0xff] %vm500, %v282
    %522 = vst.msk [vmem:[%s3 + $0xa8] sm:$0xff] %vm500, %v287
    %523 = vst.msk [vmem:[%s3 + $0xb0] sm:$0xff] %vm500, %v292
    %524 = vst.msk [vmem:[%s3 + $0xb8] sm:$0xff] %vm500, %v297
    %525 = vst.msk [vmem:[%s3 + $0xc0] sm:$0xff] %vm500, %v302
    %526 = vst.msk [vmem:[%s3 + $0xc8] sm:$0xff] %vm500, %v307
    %527 = vst.msk [vmem:[%s3 + $0xd0] sm:$0xff] %vm500, %v312
    %528 = vst.msk [vmem:[%s3 + $0xd8] sm:$0xff] %vm500, %v317
    %529 = vst.msk [vmem:[%s3 + $0xe0] sm:$0xff] %vm500, %v322
    %530 = vst.msk [vmem:[%s3 + $0xe8] sm:$0xff] %vm500, %v327
    %531 = vst.msk [vmem:[%s3 + $0xf0] sm:$0xff] %vm500, %v332
    %532 = vst.msk [vmem:[%s3 + $0xf8] sm:$0xff] %vm500, %v337
    %533 = vst.msk [vmem:[%s3 + $0x100] sm:$0xff] %vm500, %v342
    %534 = vst.msk [vmem:[%s3 + $0x108] sm:$0xff] %vm500, %v347
    %535 = vst.msk [vmem:[%s3 + $0x110] sm:$0xff] %vm500, %v352
    %536 = vst.msk [vmem:[%s3 + $0x118] sm:$0xff] %vm500, %v357
    %537 = vst.msk [vmem:[%s3 + $0x120] sm:$0xff] %vm500, %v362
    %538 = vst.msk [vmem:[%s3 + $0x128] sm:$0xff] %vm500, %v367
    %539 = vst.msk [vmem:[%s3 + $0x130] sm:$0xff] %vm500, %v372
    %540 = vst.msk [vmem:[%s3 + $0x138] sm:$0xff] %vm500, %v377
    %541 = vst.msk [vmem:[%s3 + $0x140] sm:$0xff] %vm500, %v382
    %542 = vst.msk [vmem:[%s3 + $0x148] sm:$0xff] %vm500, %v387
    %543 = vst.msk [vmem:[%s3 + $0x150] sm:$0xff] %vm500, %v392
    %544 = vst.msk [vmem:[%s3 + $0x158] sm:$0xff] %vm500, %v397
    %545 = vst.msk [vmem:[%s3 + $0x160] sm:$0xff] %vm500, %v402
    %546 = vst.msk [vmem:[%s3 + $0x168] sm:$0xff] %vm500, %v407
    %547 = vst.msk [vmem:[%s3 + $0x170] sm:$0xff] %vm500, %v412
    %548 = vst.msk [vmem:[%s3 + $0x178] sm:$0xff] %vm500, %v417
    %549 = vst.msk [vmem:[%s3 + $0x180] sm:$0xff] %vm500, %v422
    %550 = vst.msk [vmem:[%s3 + $0x188] sm:$0xff] %vm500, %v427
    %551 = vst.msk [vmem:[%s3 + $0x190] sm:$0xff] %vm500, %v432
    %552 = vst.msk [vmem:[%s3 + $0x198] sm:$0xff] %vm500, %v437
    %553 = vst.msk [vmem:[%s3 + $0x1a0] sm:$0xff] %vm500, %v442
    %554 = vst.msk [vmem:[%s3 + $0x1a8] sm:$0xff] %vm500, %v447
    %555 = vst.msk [vmem:[%s3 + $0x1b0] sm:$0xff] %vm500, %v452
    %556 = vst.msk [vmem:[%s3 + $0x1b8] sm:$0xff] %vm500, %v457
    %557 = vst.msk [vmem:[%s3 + $0x1c0] sm:$0xff] %vm500, %v462
    %558 = vst.msk [vmem:[%s3 + $0x1c8] sm:$0xff] %vm500, %v467
    %559 = vst.msk [vmem:[%s3 + $0x1d0] sm:$0xff] %vm500, %v472
    %560 = vst.msk [vmem:[%s3 + $0x1d8] sm:$0xff] %vm500, %v477
    %561 = vst.msk [vmem:[%s3 + $0x1e0] sm:$0xff] %vm500, %v482
    %562 = vst.msk [vmem:[%s3 + $0x1e8] sm:$0xff] %vm500, %v487
    %563 = vst.msk [vmem:[%s3 + $0x1f0] sm:$0xff] %vm500, %v492
    %564 = vst.msk [vmem:[%s3 + $0x1f8] sm:$0xff] %vm500, %v497
    // Predicated region
    $region18: #{qvalue_forward.1} parent=1 // pred_check
      _
    $region19: #{qvalue_forward.1} parent=1 // pred_check_branch
      %566 = sbr.rel (0) target = $region21
    $region20: #{qvalue_forward.1} parent=1 // pred_region
      _
    $region21: #{qvalue_forward.1} parent=1 // pred_fallthru
      _
    // Predicated region
    $region22: #{qvalue_forward.1} parent=1 // pred_check
      _
    $region23: #{qvalue_forward.1} parent=1 // pred_check_branch
      %568 = sbr.rel (0) target = $region25
    $region24: #{qvalue_forward.1} parent=1 // pred_region
      _
    $region25: #{qvalue_forward.1} parent=1 // pred_fallthru
      _
    %569 = vsyncpa [#allocation3], 1

</llo_original>
